<compile_context>
chip_gen: v5e
topology: v5e:2x2
jax: 0.10.0
libtpu: 0.0.40
codegen_flags: <defaults>
</compile_context>

<pallas_src>
import functools

import jax
import jax.numpy as jnp
from jax import lax
from jax.experimental import pallas as pl
from jax.experimental.pallas import tpu as pltpu

BN_EPS = 1e-5  # nn.BatchNorm3d default eps


def _pick_block(total, cap=8192, quantum=128):
    """Largest divisor of `total` that is <= cap and a multiple of `quantum`.

    Falls back to the full extent (exempt from the (8,128) rule) if none exists.
    """
    for b in range(min(cap, total), quantum - 1, -1):
        if total % b == 0 and b % quantum == 0:
            return b
    return total


# ---------------------------------------------------------------------------
# Kernel 1: per-row sum / sum-of-squares (single-pass BN batch statistics).
# ---------------------------------------------------------------------------
def _moments_kernel(xt_ref, sum_ref, sq_ref):
    # xt_ref : (1, K, bs)  block of the space-to-depth input, K = 8*C_in
    # sum_ref, sq_ref : (K, 1) accumulators, resident in VMEM across the whole grid
    @pl.when((pl.program_id(0) == 0) & (pl.program_id(1) == 0))
    def _init():
        sum_ref[...] = jnp.zeros_like(sum_ref)
        sq_ref[...] = jnp.zeros_like(sq_ref)

    blk = xt_ref[0]                                        # (K, bs), lane-dense
    sum_ref[...] += jnp.sum(blk, axis=1, keepdims=True)
    sq_ref[...] += jnp.sum(blk * blk, axis=1, keepdims=True)


# ---------------------------------------------------------------------------
# Kernel 2: folded-BN + Conv3d(k=2, s=2) + bias, one contraction per block.
# ---------------------------------------------------------------------------
def _conv_kernel(xt_ref, w_ref, b_ref, out_ref):
    # xt_ref : (1, K, bs)   space-to-depth input block
    # w_ref  : (C_out, K)   BN-folded conv weights
    # b_ref  : (C_out, 1)   BN-folded conv bias
    # out_ref: (1, C_out, bs)  lane-dense output block
    x = xt_ref[0]                                          # (K, bs)
    acc = jnp.dot(w_ref[...], x, preferred_element_type=jnp.float32)   # (C_out, bs)
    out_ref[0] = acc + b_ref[...]                          # bias broadcast over lanes


# ---------------------------------------------------------------------------
# Parameters (shapes match the PyTorch module).
# ---------------------------------------------------------------------------
def init_downconv_params(key, in_channels, out_channels):
    ks = jax.random.split(key, 4)

    def u(k, shape, lo=-0.3, hi=0.3):
        return jax.random.uniform(k, shape, jnp.float32, lo, hi)

    return {
        "bn_gamma": 1.0 + 0.1 * u(ks[0], (in_channels,)),       # BatchNorm3d weight
        "bn_beta": 0.1 * u(ks[1], (in_channels,)),               # BatchNorm3d bias
        "conv_w": u(ks[2], (out_channels, in_channels, 2, 2, 2)),
        "conv_b": u(ks[3], (out_channels,)),
    }


# ---------------------------------------------------------------------------
# Forward wrapper.
# ---------------------------------------------------------------------------
def downconv_forward(x, params):
    N, C, D, H, W = x.shape
    Cout = params["conv_w"].shape[0]
    D2, H2, W2 = D // 2, H // 2, W // 2
    S = D2 * H2 * W2
    K = 8 * C

    # TODO(synk): for odd spatial dims PyTorch computes BN stats on the full tensor while the
    # stride-2 conv drops the trailing element; here we crop first, which only differs then.
    x = x[:, :, : 2 * D2, : 2 * H2, : 2 * W2].astype(jnp.float32)

    # Space-to-depth (single XLA pass): row k = ((ci*2+kd)*2+kh)*2+kw, lane axis = flattened
    # output spatial index s = (do*H2+ho)*W2+wo.  Everything downstream is stride-free.
    xt = x.reshape(N, C, D2, 2, H2, 2, W2, 2)
    xt = jnp.transpose(xt, (0, 1, 3, 5, 7, 2, 4, 6)).reshape(N, K, S)

    bs = _pick_block(S)
    grid = (N, S // bs)

    # --- pass 1: per-row moments (single-pass BN statistics) ---
    row_sum, row_sq = pl.pallas_call(
        _moments_kernel,
        out_shape=(jax.ShapeDtypeStruct((K, 1), jnp.float32),
                   jax.ShapeDtypeStruct((K, 1), jnp.float32)),
        grid=grid,
        in_specs=[pl.BlockSpec((1, K, bs), lambda n, sb: (n, 0, sb))],
        out_specs=(pl.BlockSpec((K, 1), lambda n, sb: (0, 0)),
                   pl.BlockSpec((K, 1), lambda n, sb: (0, 0))),
        compiler_params=pltpu.CompilerParams(
            dimension_semantics=("arbitrary", "arbitrary"),
            vmem_limit_bytes=32 * 1024 * 1024),
    )(xt)

    # --- tiny C-sized math: batch stats (biased var) + fold BN affine into the conv ---
    cnt = jnp.float32(N * (2 * D2) * (2 * H2) * (2 * W2))
    ch_sum = row_sum.reshape(C, 8).sum(axis=1)
    ch_sq = row_sq.reshape(C, 8).sum(axis=1)
    mean = ch_sum / cnt
    var = jnp.maximum(ch_sq / cnt - mean * mean, 0.0)        # biased, training-mode BN
    scale = params["bn_gamma"] * lax.rsqrt(var + BN_EPS)
    shift = params["bn_beta"] - mean * scale

    # conv(BN(x)) == conv'(x):  w'[o,i,...] = w[o,i,...]*scale[i]
    #                           b'[o]       = b[o] + sum_i,taps w[o,i,...]*shift[i]
    w = params["conv_w"]                                     # (Cout, C, 2, 2, 2)
    w_eff = (w * scale[None, :, None, None, None]).reshape(Cout, K)
    b_eff = params["conv_b"] + (w * shift[None, :, None, None, None]).sum(axis=(1, 2, 3, 4))
    b_eff = b_eff.reshape(Cout, 1)

    # --- pass 2: fused folded-BN conv, lane-dense output ---
    out_t = pl.pallas_call(
        _conv_kernel,
        out_shape=jax.ShapeDtypeStruct((N, Cout, S), jnp.float32),
        grid=grid,
        in_specs=[pl.BlockSpec((1, K, bs), lambda n, sb: (n, 0, sb)),
                  pl.BlockSpec((Cout, K), lambda n, sb: (0, 0)),
                  pl.BlockSpec((Cout, 1), lambda n, sb: (0, 0))],
        out_specs=pl.BlockSpec((1, Cout, bs), lambda n, sb: (n, 0, sb)),
        compiler_params=pltpu.CompilerParams(
            dimension_semantics=("parallel", "parallel"),
            vmem_limit_bytes=32 * 1024 * 1024),
    )(xt, w_eff, b_eff)

    return out_t.reshape(N, Cout, D2, H2, W2)


# ---------------------------------------------------------------------------
# Pure-JAX reference (BN training-mode batch stats + Conv3d k=2 s=2).
# ---------------------------------------------------------------------------
def ref_forward(x, params):
    x = x.astype(jnp.float32)
    mean = jnp.mean(x, axis=(0, 2, 3, 4))
    var = jnp.var(x, axis=(0, 2, 3, 4))                      # biased
    bc = lambda v: v[None, :, None, None, None]
    xn = (x - bc(mean)) * bc(lax.rsqrt(var + BN_EPS))
    xn = xn * bc(params["bn_gamma"]) + bc(params["bn_beta"])
    N, C, D, H, W = x.shape
    D2, H2, W2 = D // 2, H // 2, W // 2
    xr = xn.reshape(N, C, D2, 2, H2, 2, W2, 2)
    out = jnp.einsum("nidphqwr,oipqr->nodhw", xr, params["conv_w"])
    return out + params["conv_b"][None, :, None, None, None]


if __name__ == "__main__":
    key = jax.random.PRNGKey(0)
    k_params, k_x = jax.random.split(key)

    N, Cin, Cout = 2, 4, 8
    D = H = W = 16

    params = init_downconv_params(k_params, Cin, Cout)
    x = jax.random.normal(k_x, (N, Cin, D, H, W), jnp.float32)

    fwd = jax.jit(functools.partial(downconv_forward, params=params))
    y = jax.block_until_ready(fwd(x))

    assert y.shape == (N, Cout, D // 2, H // 2, W // 2)
    assert bool(jnp.isfinite(y).all())

    y_ref = ref_forward(x, params)
    max_err = float(jnp.max(jnp.abs(y - y_ref)))
    assert bool(jnp.allclose(y, y_ref, atol=3e-2, rtol=3e-2)), max_err

    print("KERNEL_OK")
</pallas_src>

<mosaic_0001>
module attributes {stable_mosaic.version = 11 : i64} {
  func.func @_moments_kernel(%arg0: i32, %arg1: i32, %arg2: memref<1x32x512xf32, #tpu.memory_space<vmem>>, %arg3: memref<32x1xf32, #tpu.memory_space<vmem>>, %arg4: memref<32x1xf32, #tpu.memory_space<vmem>>) attributes {dimension_semantics = [#tpu.dimension_semantics<arbitrary>, #tpu.dimension_semantics<arbitrary>], iteration_bounds = array<i64: 2, 1>, scalar_prefetch = 0 : i64, scratch_operands = 0 : i64, tpu.core_type = #tpu.core_type<tc>, window_params = [{transform_indices = @transform_0, window_bounds = array<i64: 1, 32, 512>}, {pipeline_mode = #tpu.pipeline_mode<synchronous>, transform_indices = @transform_1, window_bounds = array<i64: 32, 1>}, {pipeline_mode = #tpu.pipeline_mode<synchronous>, transform_indices = @transform_2, window_bounds = array<i64: 32, 1>}]} {
    %c0_i32 = arith.constant 0 : i32
    %0 = arith.cmpi eq, %arg0, %c0_i32 : i32
    %c0_i32_0 = arith.constant 0 : i32
    %1 = arith.cmpi eq, %arg1, %c0_i32_0 : i32
    %2 = arith.andi %0, %1 : i1
    %3 = arith.extui %2 : i1 to i32
    %c0_i32_1 = arith.constant 0 : i32
    %4 = arith.cmpi ne, %3, %c0_i32_1 : i32
    scf.if %4 {
      %cst_13 = arith.constant 0.000000e+00 : f32
      %18 = vector.broadcast %cst_13 : f32 to vector<32x1xf32>
      %c0_14 = arith.constant 0 : index
      %c0_15 = arith.constant 0 : index
      %19 = vector.load %arg3[%c0_14, %c0_15] : memref<32x1xf32, #tpu.memory_space<vmem>>, vector<32x1xf32>
      tpu.vector_store %arg3[%c0_14, %c0_15], %18 {strides = array<i32>} : memref<32x1xf32, #tpu.memory_space<vmem>>, vector<32x1xf32>,
      %cst_16 = arith.constant 0.000000e+00 : f32
      %20 = vector.broadcast %cst_16 : f32 to vector<32x1xf32>
      %c0_17 = arith.constant 0 : index
      %c0_18 = arith.constant 0 : index
      %21 = vector.load %arg4[%c0_17, %c0_18] : memref<32x1xf32, #tpu.memory_space<vmem>>, vector<32x1xf32>
      tpu.vector_store %arg4[%c0_17, %c0_18], %20 {strides = array<i32>} : memref<32x1xf32, #tpu.memory_space<vmem>>, vector<32x1xf32>,
    } else {
    }
    %c0 = arith.constant 0 : index
    %c0_2 = arith.constant 0 : index
    %c0_3 = arith.constant 0 : index
    %5 = vector.load %arg2[%c0, %c0_2, %c0_3] : memref<1x32x512xf32, #tpu.memory_space<vmem>>, vector<1x32x512xf32>
    %6 = vector.shape_cast %5 : vector<1x32x512xf32> to vector<32x512xf32>
    %c0_4 = arith.constant 0 : index
    %c0_5 = arith.constant 0 : index
    %7 = vector.load %arg3[%c0_4, %c0_5] : memref<32x1xf32, #tpu.memory_space<vmem>>, vector<32x1xf32>
    %cst = arith.constant dense<0.000000e+00> : vector<32xf32>
    %8 = vector.multi_reduction <add>, %6, %cst [1] : vector<32x512xf32> to vector<32xf32>
    %9 = vector.shape_cast %8 : vector<32xf32> to vector<32x1xf32>
    %10 = arith.addf %7, %9 : vector<32x1xf32>
    %c0_6 = arith.constant 0 : index
    %c0_7 = arith.constant 0 : index
    %11 = vector.load %arg3[%c0_6, %c0_7] : memref<32x1xf32, #tpu.memory_space<vmem>>, vector<32x1xf32>
    tpu.vector_store %arg3[%c0_6, %c0_7], %10 {strides = array<i32>} : memref<32x1xf32, #tpu.memory_space<vmem>>, vector<32x1xf32>,
    %c0_8 = arith.constant 0 : index
    %c0_9 = arith.constant 0 : index
    %12 = vector.load %arg4[%c0_8, %c0_9] : memref<32x1xf32, #tpu.memory_space<vmem>>, vector<32x1xf32>
    %13 = arith.mulf %6, %6 : vector<32x512xf32>
    %cst_10 = arith.constant dense<0.000000e+00> : vector<32xf32>
    %14 = vector.multi_reduction <add>, %13, %cst_10 [1] : vector<32x512xf32> to vector<32xf32>
    %15 = vector.shape_cast %14 : vector<32xf32> to vector<32x1xf32>
    %16 = arith.addf %12, %15 : vector<32x1xf32>
    %c0_11 = arith.constant 0 : index
    %c0_12 = arith.constant 0 : index
    %17 = vector.load %arg4[%c0_11, %c0_12] : memref<32x1xf32, #tpu.memory_space<vmem>>, vector<32x1xf32>
    tpu.vector_store %arg4[%c0_11, %c0_12], %16 {strides = array<i32>} : memref<32x1xf32, #tpu.memory_space<vmem>>, vector<32x1xf32>,
    return
  }
  func.func @transform_0(%arg0: i32, %arg1: i32) -> (i32, i32, i32) {
    %c0_i32 = arith.constant 0 : i32
    %c0_i32_0 = arith.constant 0 : i32
    return %arg0, %c0_i32, %arg1 : i32, i32, i32
  }
  func.func @transform_1(%arg0: i32, %arg1: i32) -> (i32, i32) {
    %c0_i32 = arith.constant 0 : i32
    %c0_i32_0 = arith.constant 0 : i32
    %c0_i32_1 = arith.constant 0 : i32
    return %c0_i32, %c0_i32_0 : i32, i32
  }
  func.func @transform_2(%arg0: i32, %arg1: i32) -> (i32, i32) {
    %c0_i32 = arith.constant 0 : i32
    %c0_i32_0 = arith.constant 0 : i32
    %c0_i32_1 = arith.constant 0 : i32
    return %c0_i32, %c0_i32_0 : i32, i32
  }
}

module attributes {stable_mosaic.version = 11 : i64} {
  func.func @_conv_kernel(%arg0: i32, %arg1: i32, %arg2: memref<1x32x512xf32, #tpu.memory_space<vmem>>, %arg3: memref<8x32xf32, #tpu.memory_space<vmem>>, %arg4: memref<8x1xf32, #tpu.memory_space<vmem>>, %arg5: memref<1x8x512xf32, #tpu.memory_space<vmem>>) attributes {dimension_semantics = [#tpu.dimension_semantics<parallel>, #tpu.dimension_semantics<parallel>], iteration_bounds = array<i64: 2, 1>, scalar_prefetch = 0 : i64, scratch_operands = 0 : i64, tpu.core_type = #tpu.core_type<tc>, window_params = [{transform_indices = @transform_0, window_bounds = array<i64: 1, 32, 512>}, {pipeline_mode = #tpu.pipeline_mode<synchronous>, transform_indices = @transform_1, window_bounds = array<i64: 8, 32>}, {pipeline_mode = #tpu.pipeline_mode<synchronous>, transform_indices = @transform_2, window_bounds = array<i64: 8, 1>}, {transform_indices = @transform_3, window_bounds = array<i64: 1, 8, 512>}]} {
    %c0 = arith.constant 0 : index
    %c0_0 = arith.constant 0 : index
    %c0_1 = arith.constant 0 : index
    %0 = vector.load %arg2[%c0, %c0_0, %c0_1] : memref<1x32x512xf32, #tpu.memory_space<vmem>>, vector<1x32x512xf32>
    %1 = vector.shape_cast %0 : vector<1x32x512xf32> to vector<32x512xf32>
    %c0_2 = arith.constant 0 : index
    %c0_3 = arith.constant 0 : index
    %2 = vector.load %arg3[%c0_2, %c0_3] : memref<8x32xf32, #tpu.memory_space<vmem>>, vector<8x32xf32>
    %cst = arith.constant dense<0.000000e+00> : vector<8x512xf32>
    %3 = tpu.matmul %2, %1, %cst {dimension_numbers = #tpu.dot_dimension_numbers<[1], [0], [0], [1], [0, 0, 1, 1], [], []>} : vector<8x32xf32>, vector<32x512xf32>, vector<8x512xf32> -> vector<8x512xf32>
    %c0_4 = arith.constant 0 : index
    %c0_5 = arith.constant 0 : index
    %4 = vector.load %arg4[%c0_4, %c0_5] : memref<8x1xf32, #tpu.memory_space<vmem>>, vector<8x1xf32>
    %5 = vector.broadcast %4 : vector<8x1xf32> to vector<8x512xf32>
    %6 = arith.addf %3, %5 : vector<8x512xf32>
    %c0_6 = arith.constant 0 : index
    %c0_7 = arith.constant 0 : index
    %c0_8 = arith.constant 0 : index
    %7 = vector.load %arg5[%c0_6, %c0_7, %c0_8] : memref<1x8x512xf32, #tpu.memory_space<vmem>>, vector<1x8x512xf32>
    %8 = vector.shape_cast %7 : vector<1x8x512xf32> to vector<8x512xf32>
    %9 = vector.shape_cast %6 : vector<8x512xf32> to vector<1x8x512xf32>
    tpu.vector_store %arg5[%c0_6, %c0_7, %c0_8], %9 {strides = array<i32>} : memref<1x8x512xf32, #tpu.memory_space<vmem>>, vector<1x8x512xf32>,
    return
  }
  func.func @transform_0(%arg0: i32, %arg1: i32) -> (i32, i32, i32) {
    %c0_i32 = arith.constant 0 : i32
    %c0_i32_0 = arith.constant 0 : i32
    return %arg0, %c0_i32, %arg1 : i32, i32, i32
  }
  func.func @transform_1(%arg0: i32, %arg1: i32) -> (i32, i32) {
    %c0_i32 = arith.constant 0 : i32
    %c0_i32_0 = arith.constant 0 : i32
    %c0_i32_1 = arith.constant 0 : i32
    return %c0_i32, %c0_i32_0 : i32, i32
  }
  func.func @transform_2(%arg0: i32, %arg1: i32) -> (i32, i32) {
    %c0_i32 = arith.constant 0 : i32
    %c0_i32_0 = arith.constant 0 : i32
    %c0_i32_1 = arith.constant 0 : i32
    return %c0_i32, %c0_i32_0 : i32, i32
  }
  func.func @transform_3(%arg0: i32, %arg1: i32) -> (i32, i32, i32) {
    %c0_i32 = arith.constant 0 : i32
    %c0_i32_0 = arith.constant 0 : i32
    return %arg0, %c0_i32, %arg1 : i32, i32, i32
  }
}

</mosaic_0001>

<llo_original>
// kernel: downconv_forward.2
$region0: #{downconv_forward.2}
  #allocation0 [shape = 'u32[]', space=smem, size = 0x4, offset = 0x4, fixed_abs, tag = 'smem constant byte address 0x4 - core index']
  #allocation1 [shape = 'u32[72,128]{1,0:T(1,128)}', space=vmem, size = 0x9000, scoped, tag = 'internal scratch']
  %s0 = inlined_call_operand.vmem [shape: f32[2,32,512], index: 0, kind: input, shape index: {}]
  %s1 = inlined_call_operand.vmem [shape: f32[32,1], index: 1, kind: output, shape index: {0}]
  %s2 = inlined_call_operand.vmem [shape: f32[32,1], index: 2, kind: output, shape index: {1}]
  %3 = xla_tuple %s1, %s2
  %s4 = sld [smem:[#allocation0]]
  $region49: #{downconv_forward.2} parent=0
    _
  %s6 = ssub.s32 1, %s4
  %s7 = scalar_select 0, %s6, %s4
  loop: start=0, step=1, limit=4
  $region2: #{downconv_forward.2} parent=0 // loop_pre_header
    _
  $region3: #{downconv_forward.2} parent=0 // loop_header
    %s9 = sphi 0, %s13
    %p10 = scmp.ge.s32.totalorder %s9, 4
    %s16 = sphi 0, %s28
    %s17 = sphi 0, %s24
    %s18 = sphi 0, %s16
    %s19 = sphi 0, %s17
    %s20 = sphi 0, %s18
    %s21 = sphi 0, %s19
    %s33 = sphi 0, %s35
    %s36 = sphi 0, %s33
    %s37 = sphi 0, %s36
    %s53 = sphi 0, %s37
    %s57 = sphi 0, %s57
    %s59 = sphi 0, %s57
    %s60 = sphi 0, %s59
    %s74 = sphi 0, %s60
    %s78 = sphi 0, %s78
    %s80 = sphi 0, %s78
    %s81 = sphi 0, %s80
    %s95 = sphi 0, %s81
  $region4: #{downconv_forward.2} parent=0 // loop_header_branch
    %12 = sbr.rel (%p10) target = $region8
  $region5: #{downconv_forward.2} parent=0 // loop_body
    %s14 = ssub.s32 %s9, 1
    %s15 = ssub.s32 %s9, 2
    %s22 = sadd.s32 1, %s17
    %p23 = scmp.ge.s32.totalorder %s22, 1
    %s24 = scalar_select %p23, 0, %s22
    %s25 = sadd.s32 1, %s16
    %s26 = scalar_select %p23, %s25, %s16
    %p27 = scmp.ge.s32.totalorder %s26, 2
    %s28 = scalar_select %p27, 0, %s26
    %s29 = ssub.s32 %s16, %s28
    %s30 = ssub.s32 %s17, %s24
    %s31 = sor.u32 %s29, %s30
    %p32 = scmp.eq.s32.totalorder %s31, 0
    %s34 = sadd.s32 %s33, 1
    %s35 = scalar_select %p32, %s33, %s34
    %p38 = pneg %p32
    %p39 = scmp.eq.s32.totalorder %s9, 1
    %p40 = por %p38, %p39
    %p41 = scmp.ne.s32.totalorder %s33, %s36
    %p42 = scmp.eq.s32.totalorder %s9, 0
    %p43 = por %p41, %p42
    %p44 = scmp.ne.s32.totalorder %s33, %s36
    %p45 = scmp.eq.s32.totalorder %s14, 1
    %p46 = por %p44, %p45
    %p47 = scmp.ne.s32.totalorder %s36, %s37
    %p48 = scmp.eq.s32.totalorder %s14, 0
    %p49 = por %p47, %p48
    %p50 = scmp.ne.s32.totalorder %s36, %s37
    %p51 = scmp.eq.s32.totalorder %s15, 1
    %p52 = por %p50, %p51
    %p54 = scmp.ne.s32.totalorder %s37, %s53
    %p55 = scmp.eq.s32.totalorder %s15, 0
    %p56 = por %p54, %p55
    %s58 = sadd.s32 %s57, 1
    %p61 = scmp.eq.s32.totalorder %s9, 1
    %p62 = scmp.ne.s32.totalorder %s57, %s59
    %p63 = scmp.eq.s32.totalorder %s9, 0
    %p64 = por %p62, %p63
    %p65 = scmp.ne.s32.totalorder %s57, %s59
    %p66 = scmp.eq.s32.totalorder %s14, 1
    %p67 = por %p65, %p66
    %p68 = scmp.ne.s32.totalorder %s59, %s60
    %p69 = scmp.eq.s32.totalorder %s14, 0
    %p70 = por %p68, %p69
    %p71 = scmp.ne.s32.totalorder %s59, %s60
    %p72 = scmp.eq.s32.totalorder %s15, 1
    %p73 = por %p71, %p72
    %p75 = scmp.ne.s32.totalorder %s60, %s74
    %p76 = scmp.eq.s32.totalorder %s15, 0
    %p77 = por %p75, %p76
    %s79 = sadd.s32 %s78, 1
    %p82 = scmp.eq.s32.totalorder %s9, 1
    %p83 = scmp.ne.s32.totalorder %s78, %s80
    %p84 = scmp.eq.s32.totalorder %s9, 0
    %p85 = por %p83, %p84
    %p86 = scmp.ne.s32.totalorder %s78, %s80
    %p87 = scmp.eq.s32.totalorder %s14, 1
    %p88 = por %p86, %p87
    %p89 = scmp.ne.s32.totalorder %s80, %s81
    %p90 = scmp.eq.s32.totalorder %s14, 0
    %p91 = por %p89, %p90
    %p92 = scmp.ne.s32.totalorder %s80, %s81
    %p93 = scmp.eq.s32.totalorder %s15, 1
    %p94 = por %p92, %p93
    %p96 = scmp.ne.s32.totalorder %s81, %s95
    %p97 = scmp.eq.s32.totalorder %s15, 0
    %p98 = por %p96, %p97
    %p99 = scmp.le.s32.totalorder 1, %s9
    %p100 = scmp.lt.s32.totalorder %s9, 3
    %p101 = pnand %p99, %p100
    %p102 = pneg %p101
    // Predicated region
    $region9: #{downconv_forward.2} parent=5 // pred_check
      _
    $region10: #{downconv_forward.2} parent=5 // pred_check_branch
      %104 = sbr.rel (%p101) target = $region12
    $region11: #{downconv_forward.2} parent=5 // pred_region
      %s105 = ssub.s32 %s9, 1
    $region12: #{downconv_forward.2} parent=5 // pred_fallthru
      _
    %p106 = scmp.lt.s32.totalorder %s9, 2
    // Predicated region
    $region13: #{downconv_forward.2} parent=5 // pred_check
      %p107 = pneg %p106
    $region14: #{downconv_forward.2} parent=5 // pred_check_branch
      %109 = sbr.rel (%p107) target = $region16
    $region15: #{downconv_forward.2} parent=5 // pred_region
      // Predicated region
      $region17: #{downconv_forward.2} parent=15 // pred_check
        %p110 = pneg %p43
      $region18: #{downconv_forward.2} parent=15 // pred_check_branch
        %112 = sbr.rel (%p110) target = $region20
      $region19: #{downconv_forward.2} parent=15 // pred_region
        %s113 = smul.u32 4, %s17
        %p114 = scmp.lt.s32.totalorder %s16, 1
        %s115 = scalar_select %p114, %s16, 1
        %p116 = scmp.lt.s32.totalorder %s113, 3
        %s117 = scalar_select %p116, %s113, 3
        %s118 = smul.addr %s115, 16
        %s119 = sadd.s32 %s117, %s118
        %s120 = smul.addr %s119, 8
        %s121 = scalar_lea.vmem %s0, %s120
        %s122 = smul.u32 4, %s17
      $region20: #{downconv_forward.2} parent=15 // pred_fallthru
        _
    $region16: #{downconv_forward.2} parent=5 // pred_fallthru
      _
    %p123 = scmp.le.s32.totalorder 1, %s9
    %p124 = scmp.lt.s32.totalorder %s9, 3
    %p125 = pnand %p123, %p124
    %p126 = pneg %p125
    // Predicated region
    $region21: #{downconv_forward.2} parent=5 // pred_check
      _
    $region22: #{downconv_forward.2} parent=5 // pred_check_branch
      %128 = sbr.rel (%p125) target = $region24
    $region23: #{downconv_forward.2} parent=5 // pred_region
      %s129 = ssub.s32 %s9, 1
      %s130 = smul.u32 4, %s19
      %p131 = scmp.lt.s32.totalorder %s18, 1
      %s132 = scalar_select %p131, %s18, 1
      %p133 = scmp.lt.s32.totalorder %s130, 3
      %s134 = scalar_select %p133, %s130, 3
      %s135 = smul.addr %s132, 16
      %s136 = sadd.s32 %s134, %s135
      %s137 = smul.addr %s136, 8
      %s138 = scalar_lea.vmem %s0, %s137
      %p139 = pneg %p49
      %p140 = pneg %p46
      %p141 = pneg %p70
      %p142 = pneg %p67
      %p143 = pneg %p91
      %p144 = pneg %p88
      %s145 = smul.u32 4, %s19
      %p146 = scmp.lt.s32.totalorder %s18, 1
      %s147 = scalar_select %p146, %s18, 1
      %p148 = scmp.lt.s32.totalorder %s145, 3
      %s149 = scalar_select %p148, %s145, 3
      %s150 = smul.addr %s147, 16
      %s151 = sadd.s32 %s149, %s150
      %s152 = smul.addr %s151, 8
      %s153 = scalar_lea.vmem %s0, %s152
      %s154 = smul.u32 4, %s19
      %p155 = scmp.eq.s32.totalorder %s18, 0
      %p156 = scmp.eq.s32.totalorder %s19, 0
      %p157 = pnand %p155, %p156
      %p158 = pneg %p157
      // Predicated region
      $region25: #{downconv_forward.2} parent=23 // pred_check
        _
      $region26: #{downconv_forward.2} parent=23 // pred_check_branch
        %160 = sbr.rel (%p157) target = $region28
      $region27: #{downconv_forward.2} parent=23 // pred_region
        %vm161 = vcmask 7168
        %162 = vst.msk [vmem:[%s1] sm:$0xff] %vm161, 0.0
        %163 = vst.msk [vmem:[%s1 + $0x8] sm:$0xff] %vm161, 0.0
        %164 = vst.msk [vmem:[%s1 + $0x10] sm:$0xff] %vm161, 0.0
        %165 = vst.msk [vmem:[%s1 + $0x18] sm:$0xff] %vm161, 0.0
        %166 = vst.msk [vmem:[%s2] sm:$0xff] %vm161, 0.0
        %167 = vst.msk [vmem:[%s2 + $0x8] sm:$0xff] %vm161, 0.0
        %168 = vst.msk [vmem:[%s2 + $0x10] sm:$0xff] %vm161, 0.0
        %169 = vst.msk [vmem:[%s2 + $0x18] sm:$0xff] %vm161, 0.0
      $region28: #{downconv_forward.2} parent=23 // pred_fallthru
        _
      %v170 = vld [vmem:[%s153] sm:$0xff]
      %v171 = vld [vmem:[%s153 + $0x8] sm:$0xff]
      %v172 = vld [vmem:[%s153 + $0x10] sm:$0xff]
      %v173 = vld [vmem:[%s153 + $0x18] sm:$0xff]
      %v174 = vld [vmem:[%s153 + $0x20] sm:$0xff]
      %v175 = vld [vmem:[%s153 + $0x28] sm:$0xff]
      %v176 = vld [vmem:[%s153 + $0x30] sm:$0xff]
      %v177 = vld [vmem:[%s153 + $0x38] sm:$0xff]
      %v178 = vld [vmem:[%s153 + $0x40] sm:$0xff]
      %v179 = vld [vmem:[%s153 + $0x48] sm:$0xff]
      %v180 = vld [vmem:[%s153 + $0x50] sm:$0xff]
      %v181 = vld [vmem:[%s153 + $0x58] sm:$0xff]
      %v182 = vld [vmem:[%s153 + $0x60] sm:$0xff]
      %v183 = vld [vmem:[%s153 + $0x68] sm:$0xff]
      %v184 = vld [vmem:[%s153 + $0x70] sm:$0xff]
      %v185 = vld [vmem:[%s153 + $0x78] sm:$0xff]
      %v186 = vld [vmem:[%s1] sm:$0xff]
      %v187 = vld [vmem:[%s1 + $0x8] sm:$0xff]
      %v188 = vld [vmem:[%s1 + $0x10] sm:$0xff]
      %v189 = vld [vmem:[%s1 + $0x18] sm:$0xff]
      %v190 = vadd.f32 %v170, %v171
      %v191 = vadd.f32 %v190, %v172
      %v192 = vadd.f32 %v191, %v173
      %193 = vadd.xlane.f32.xlu0 %v192
      %v194 = vpop.xlane.xlu0 %193
      %v195 = vadd.f32 %v174, %v175
      %v196 = vadd.f32 %v195, %v176
      %v197 = vadd.f32 %v196, %v177
      %198 = vadd.xlane.f32.xlu0 %v197
      %v199 = vpop.xlane.xlu0 %198
      %v200 = vadd.f32 %v178, %v179
      %v201 = vadd.f32 %v200, %v180
      %v202 = vadd.f32 %v201, %v181
      %203 = vadd.xlane.f32.xlu0 %v202
      %v204 = vpop.xlane.xlu0 %203
      %v205 = vadd.f32 %v182, %v183
      %v206 = vadd.f32 %v205, %v184
      %v207 = vadd.f32 %v206, %v185
      %208 = vadd.xlane.f32.xlu0 %v207
      %v209 = vpop.xlane.xlu0 %208
      %v210 = vadd.f32 %v186, %v194
      %v211 = vadd.f32 %v187, %v199
      %v212 = vadd.f32 %v188, %v204
      %v213 = vadd.f32 %v189, %v209
      %vm214 = vcmask 7168
      %215 = vst.msk [vmem:[%s1] sm:$0xff] %vm214, %v210
      %216 = vst.msk [vmem:[%s1 + $0x8] sm:$0xff] %vm214, %v211
      %217 = vst.msk [vmem:[%s1 + $0x10] sm:$0xff] %vm214, %v212
      %218 = vst.msk [vmem:[%s1 + $0x18] sm:$0xff] %vm214, %v213
      %v219 = vld [vmem:[%s2] sm:$0xff]
      %v220 = vld [vmem:[%s2 + $0x8] sm:$0xff]
      %v221 = vld [vmem:[%s2 + $0x10] sm:$0xff]
      %v222 = vld [vmem:[%s2 + $0x18] sm:$0xff]
      %v223 = vmul.f32 %v170, %v170
      %v224 = vmul.f32 %v171, %v171
      %v225 = vmul.f32 %v172, %v172
      %v226 = vmul.f32 %v173, %v173
      %v227 = vmul.f32 %v174, %v174
      %v228 = vmul.f32 %v175, %v175
      %v229 = vmul.f32 %v176, %v176
      %v230 = vmul.f32 %v177, %v177
      %v231 = vmul.f32 %v178, %v178
      %v232 = vmul.f32 %v179, %v179
      %v233 = vmul.f32 %v180, %v180
      %v234 = vmul.f32 %v181, %v181
      %v235 = vmul.f32 %v182, %v182
      %v236 = vmul.f32 %v183, %v183
      %v237 = vmul.f32 %v184, %v184
      %v238 = vmul.f32 %v185, %v185
      %v239 = vadd.f32 %v223, %v224
      %v240 = vadd.f32 %v239, %v225
      %v241 = vadd.f32 %v240, %v226
      %242 = vadd.xlane.f32.xlu0 %v241
      %v243 = vpop.xlane.xlu0 %242
      %v244 = vadd.f32 %v227, %v228
      %v245 = vadd.f32 %v244, %v229
      %v246 = vadd.f32 %v245, %v230
      %247 = vadd.xlane.f32.xlu0 %v246
      %v248 = vpop.xlane.xlu0 %247
      %v249 = vadd.f32 %v231, %v232
      %v250 = vadd.f32 %v249, %v233
      %v251 = vadd.f32 %v250, %v234
      %252 = vadd.xlane.f32.xlu0 %v251
      %v253 = vpop.xlane.xlu0 %252
      %v254 = vadd.f32 %v235, %v236
      %v255 = vadd.f32 %v254, %v237
      %v256 = vadd.f32 %v255, %v238
      %257 = vadd.xlane.f32.xlu0 %v256
      %v258 = vpop.xlane.xlu0 %257
      %v259 = vadd.f32 %v219, %v243
      %v260 = vadd.f32 %v220, %v248
      %v261 = vadd.f32 %v221, %v253
      %v262 = vadd.f32 %v222, %v258
      %263 = vst.msk [vmem:[%s2] sm:$0xff] %vm214, %v259
      %264 = vst.msk [vmem:[%s2 + $0x8] sm:$0xff] %vm214, %v260
      %265 = vst.msk [vmem:[%s2 + $0x10] sm:$0xff] %vm214, %v261
      %266 = vst.msk [vmem:[%s2 + $0x18] sm:$0xff] %vm214, %v262
      // Predicated region
      $region29: #{downconv_forward.2} parent=23 // pred_check
        %p267 = pneg %p67
      $region30: #{downconv_forward.2} parent=23 // pred_check_branch
        %269 = sbr.rel (%p267) target = $region32
      $region31: #{downconv_forward.2} parent=23 // pred_region
        _
      $region32: #{downconv_forward.2} parent=23 // pred_fallthru
        _
      // Predicated region
      $region33: #{downconv_forward.2} parent=23 // pred_check
        %p270 = pneg %p88
      $region34: #{downconv_forward.2} parent=23 // pred_check_branch
        %272 = sbr.rel (%p270) target = $region36
      $region35: #{downconv_forward.2} parent=23 // pred_region
        _
      $region36: #{downconv_forward.2} parent=23 // pred_fallthru
        _
      // Predicated region
      $region37: #{downconv_forward.2} parent=23 // pred_check
        %p273 = pneg %p67
      $region38: #{downconv_forward.2} parent=23 // pred_check_branch
        %275 = sbr.rel (%p273) target = $region40
      $region39: #{downconv_forward.2} parent=23 // pred_region
        _
      $region40: #{downconv_forward.2} parent=23 // pred_fallthru
        _
      // Predicated region
      $region41: #{downconv_forward.2} parent=23 // pred_check
        %p276 = pneg %p88
      $region42: #{downconv_forward.2} parent=23 // pred_check_branch
        %278 = sbr.rel (%p276) target = $region44
      $region43: #{downconv_forward.2} parent=23 // pred_region
        _
      $region44: #{downconv_forward.2} parent=23 // pred_fallthru
        _
    $region24: #{downconv_forward.2} parent=5 // pred_fallthru
      _
    %p279 = scmp.le.s32.totalorder 2, %s9
    // Predicated region
    $region45: #{downconv_forward.2} parent=5 // pred_check
      %p280 = pneg %p279
    $region46: #{downconv_forward.2} parent=5 // pred_check_branch
      %282 = sbr.rel (%p280) target = $region48
    $region47: #{downconv_forward.2} parent=5 // pred_region
      %s283 = ssub.s32 %s9, 2
    $region48: #{downconv_forward.2} parent=5 // pred_fallthru
      _
  $region6: #{downconv_forward.2} parent=0 // loop_footer
    %s13 = sadd.s32 1, %s9
  $region7: #{downconv_forward.2} parent=0 // loop_footer_branch
    %8 = sbr.rel target = $region3
  $region8: #{downconv_forward.2} parent=0 // loop_exit
    _

// kernel: downconv_forward.3
$region0: #{downconv_forward.3}
  #allocation0 [shape = 'u32[]', space=smem, size = 0x4, offset = 0x4, fixed_abs, tag = 'smem constant byte address 0x4 - core index']
  #allocation1 [shape = 'u32[72,128]{1,0:T(1,128)}', space=vmem, size = 0x9000, scoped, tag = 'internal scratch']
  %s0 = inlined_call_operand.vmem [shape: f32[2,32,512], index: 0, kind: input, shape index: {}]
  %s1 = inlined_call_operand.vmem [shape: f32[8,32], index: 1, kind: input, shape index: {}]
  %s2 = inlined_call_operand.vmem [shape: f32[8,1], index: 2, kind: input, shape index: {}]
  %s3 = inlined_call_operand.vmem [shape: f32[2,8,512], index: 3, kind: output, shape index: {}]
  %s4 = sld [smem:[#allocation0]]
  $region45: #{downconv_forward.3} parent=0
    _
  %s6 = ssub.s32 1, %s4
  %s7 = scalar_select 0, %s6, %s4
  loop: start=0, step=1, limit=4
  $region2: #{downconv_forward.3} parent=0 // loop_pre_header
    _
  $region3: #{downconv_forward.3} parent=0 // loop_header
    %s9 = sphi 0, %s13
    %p10 = scmp.ge.s32.totalorder %s9, 4
    %s16 = sphi 0, %s28
    %s17 = sphi 0, %s24
    %s18 = sphi 0, %s16
    %s19 = sphi 0, %s17
    %s20 = sphi 0, %s18
    %s21 = sphi 0, %s19
    %s33 = sphi 0, %s35
    %s36 = sphi 0, %s33
    %s37 = sphi 0, %s36
    %s53 = sphi 0, %s37
    %s57 = sphi 0, %s57
    %s59 = sphi 0, %s57
    %s60 = sphi 0, %s59
    %s74 = sphi 0, %s60
    %s78 = sphi 0, %s78
    %s80 = sphi 0, %s78
    %s81 = sphi 0, %s80
    %s95 = sphi 0, %s81
    %s103 = sphi 0, %s105
    %s106 = sphi 0, %s103
    %s107 = sphi 0, %s106
    %s123 = sphi 0, %s107
  $region4: #{downconv_forward.3} parent=0 // loop_header_branch
    %12 = sbr.rel (%p10) target = $region8
  $region5: #{downconv_forward.3} parent=0 // loop_body
    %s14 = ssub.s32 %s9, 1
    %s15 = ssub.s32 %s9, 2
    %s22 = sadd.s32 1, %s17
    %p23 = scmp.ge.s32.totalorder %s22, 1
    %s24 = scalar_select %p23, 0, %s22
    %s25 = sadd.s32 1, %s16
    %s26 = scalar_select %p23, %s25, %s16
    %p27 = scmp.ge.s32.totalorder %s26, 2
    %s28 = scalar_select %p27, 0, %s26
    %s29 = ssub.s32 %s16, %s28
    %s30 = ssub.s32 %s17, %s24
    %s31 = sor.u32 %s29, %s30
    %p32 = scmp.eq.s32.totalorder %s31, 0
    %s34 = sadd.s32 %s33, 1
    %s35 = scalar_select %p32, %s33, %s34
    %p38 = pneg %p32
    %p39 = scmp.eq.s32.totalorder %s9, 1
    %p40 = por %p38, %p39
    %p41 = scmp.ne.s32.totalorder %s33, %s36
    %p42 = scmp.eq.s32.totalorder %s9, 0
    %p43 = por %p41, %p42
    %p44 = scmp.ne.s32.totalorder %s33, %s36
    %p45 = scmp.eq.s32.totalorder %s14, 1
    %p46 = por %p44, %p45
    %p47 = scmp.ne.s32.totalorder %s36, %s37
    %p48 = scmp.eq.s32.totalorder %s14, 0
    %p49 = por %p47, %p48
    %p50 = scmp.ne.s32.totalorder %s36, %s37
    %p51 = scmp.eq.s32.totalorder %s15, 1
    %p52 = por %p50, %p51
    %p54 = scmp.ne.s32.totalorder %s37, %s53
    %p55 = scmp.eq.s32.totalorder %s15, 0
    %p56 = por %p54, %p55
    %s58 = sadd.s32 %s57, 1
    %p61 = scmp.eq.s32.totalorder %s9, 1
    %p62 = scmp.ne.s32.totalorder %s57, %s59
    %p63 = scmp.eq.s32.totalorder %s9, 0
    %p64 = por %p62, %p63
    %p65 = scmp.ne.s32.totalorder %s57, %s59
    %p66 = scmp.eq.s32.totalorder %s14, 1
    %p67 = por %p65, %p66
    %p68 = scmp.ne.s32.totalorder %s59, %s60
    %p69 = scmp.eq.s32.totalorder %s14, 0
    %p70 = por %p68, %p69
    %p71 = scmp.ne.s32.totalorder %s59, %s60
    %p72 = scmp.eq.s32.totalorder %s15, 1
    %p73 = por %p71, %p72
    %p75 = scmp.ne.s32.totalorder %s60, %s74
    %p76 = scmp.eq.s32.totalorder %s15, 0
    %p77 = por %p75, %p76
    %s79 = sadd.s32 %s78, 1
    %p82 = scmp.eq.s32.totalorder %s9, 1
    %p83 = scmp.ne.s32.totalorder %s78, %s80
    %p84 = scmp.eq.s32.totalorder %s9, 0
    %p85 = por %p83, %p84
    %p86 = scmp.ne.s32.totalorder %s78, %s80
    %p87 = scmp.eq.s32.totalorder %s14, 1
    %p88 = por %p86, %p87
    %p89 = scmp.ne.s32.totalorder %s80, %s81
    %p90 = scmp.eq.s32.totalorder %s14, 0
    %p91 = por %p89, %p90
    %p92 = scmp.ne.s32.totalorder %s80, %s81
    %p93 = scmp.eq.s32.totalorder %s15, 1
    %p94 = por %p92, %p93
    %p96 = scmp.ne.s32.totalorder %s81, %s95
    %p97 = scmp.eq.s32.totalorder %s15, 0
    %p98 = por %p96, %p97
    %s99 = ssub.s32 %s16, %s28
    %s100 = ssub.s32 %s17, %s24
    %s101 = sor.u32 %s99, %s100
    %p102 = scmp.eq.s32.totalorder %s101, 0
    %s104 = sadd.s32 %s103, 1
    %s105 = scalar_select %p102, %s103, %s104
    %p108 = pneg %p102
    %p109 = scmp.eq.s32.totalorder %s9, 1
    %p110 = por %p108, %p109
    %p111 = scmp.ne.s32.totalorder %s103, %s106
    %p112 = scmp.eq.s32.totalorder %s9, 0
    %p113 = por %p111, %p112
    %p114 = scmp.ne.s32.totalorder %s103, %s106
    %p115 = scmp.eq.s32.totalorder %s14, 1
    %p116 = por %p114, %p115
    %p117 = scmp.ne.s32.totalorder %s106, %s107
    %p118 = scmp.eq.s32.totalorder %s14, 0
    %p119 = por %p117, %p118
    %p120 = scmp.ne.s32.totalorder %s106, %s107
    %p121 = scmp.eq.s32.totalorder %s15, 1
    %p122 = por %p120, %p121
    %p124 = scmp.ne.s32.totalorder %s107, %s123
    %p125 = scmp.eq.s32.totalorder %s15, 0
    %p126 = por %p124, %p125
    %p127 = scmp.le.s32.totalorder 1, %s9
    %p128 = scmp.lt.s32.totalorder %s9, 3
    %p129 = pnand %p127, %p128
    %p130 = pneg %p129
    // Predicated region
    $region9: #{downconv_forward.3} parent=5 // pred_check
      _
    $region10: #{downconv_forward.3} parent=5 // pred_check_branch
      %132 = sbr.rel (%p129) target = $region12
    $region11: #{downconv_forward.3} parent=5 // pred_region
      %s133 = ssub.s32 %s9, 1
      // Predicated region
      $region13: #{downconv_forward.3} parent=11 // pred_check
        %p134 = pneg %p70
      $region14: #{downconv_forward.3} parent=11 // pred_check_branch
        %136 = sbr.rel (%p134) target = $region16
      $region15: #{downconv_forward.3} parent=11 // pred_region
        _
      $region16: #{downconv_forward.3} parent=11 // pred_fallthru
        _
      // Predicated region
      $region17: #{downconv_forward.3} parent=11 // pred_check
        %p137 = pneg %p91
      $region18: #{downconv_forward.3} parent=11 // pred_check_branch
        %139 = sbr.rel (%p137) target = $region20
      $region19: #{downconv_forward.3} parent=11 // pred_region
        _
      $region20: #{downconv_forward.3} parent=11 // pred_fallthru
        _
    $region12: #{downconv_forward.3} parent=5 // pred_fallthru
      _
    %p140 = scmp.lt.s32.totalorder %s9, 2
    // Predicated region
    $region21: #{downconv_forward.3} parent=5 // pred_check
      %p141 = pneg %p140
    $region22: #{downconv_forward.3} parent=5 // pred_check_branch
      %143 = sbr.rel (%p141) target = $region24
    $region23: #{downconv_forward.3} parent=5 // pred_region
      // Predicated region
      $region25: #{downconv_forward.3} parent=23 // pred_check
        %p144 = pneg %p43
      $region26: #{downconv_forward.3} parent=23 // pred_check_branch
        %146 = sbr.rel (%p144) target = $region28
      $region27: #{downconv_forward.3} parent=23 // pred_region
        %s147 = smul.u32 4, %s17
        %p148 = scmp.lt.s32.totalorder %s16, 1
        %s149 = scalar_select %p148, %s16, 1
        %p150 = scmp.lt.s32.totalorder %s147, 3
        %s151 = scalar_select %p150, %s147, 3
        %s152 = smul.addr %s149, 16
        %s153 = sadd.s32 %s151, %s152
        %s154 = smul.addr %s153, 8
        %s155 = scalar_lea.vmem %s0, %s154
        %s156 = smul.u32 4, %s17
      $region28: #{downconv_forward.3} parent=23 // pred_fallthru
        _
    $region24: #{downconv_forward.3} parent=5 // pred_fallthru
      _
    %p157 = scmp.le.s32.totalorder 1, %s9
    %p158 = scmp.lt.s32.totalorder %s9, 3
    %p159 = pnand %p157, %p158
    %p160 = pneg %p159
    // Predicated region
    $region29: #{downconv_forward.3} parent=5 // pred_check
      _
    $region30: #{downconv_forward.3} parent=5 // pred_check_branch
      %162 = sbr.rel (%p159) target = $region32
    $region31: #{downconv_forward.3} parent=5 // pred_region
      %s163 = ssub.s32 %s9, 1
      %s164 = smul.u32 4, %s19
      %p165 = scmp.lt.s32.totalorder %s18, 1
      %s166 = scalar_select %p165, %s18, 1
      %p167 = scmp.lt.s32.totalorder %s164, 3
      %s168 = scalar_select %p167, %s164, 3
      %s169 = smul.addr %s166, 16
      %s170 = sadd.s32 %s168, %s169
      %s171 = smul.addr %s170, 8
      %s172 = scalar_lea.vmem %s0, %s171
      %p173 = pneg %p49
      %p174 = pneg %p46
      %p175 = pneg %p70
      %p176 = pneg %p67
      %p177 = pneg %p91
      %p178 = pneg %p88
      %p179 = pneg %p119
      %p180 = pneg %p116
      %s181 = smul.u32 4, %s19
      %p182 = scmp.lt.s32.totalorder %s18, 1
      %s183 = scalar_select %p182, %s18, 1
      %p184 = scmp.lt.s32.totalorder %s181, 3
      %s185 = scalar_select %p184, %s181, 3
      %s186 = smul.addr %s183, 4
      %s187 = sadd.s32 %s185, %s186
      %s188 = smul.addr %s187, 8
      %s189 = scalar_lea.vmem %s3, %s188
      %s190 = smul.u32 4, %s19
      %p191 = scmp.lt.s32.totalorder %s18, 1
      %s192 = scalar_select %p191, %s18, 1
      %p193 = scmp.lt.s32.totalorder %s190, 3
      %s194 = scalar_select %p193, %s190, 3
      %s195 = smul.addr %s192, 16
      %s196 = sadd.s32 %s194, %s195
      %s197 = smul.addr %s196, 8
      %s198 = scalar_lea.vmem %s0, %s197
      %s199 = smul.u32 4, %s19
      %s200 = smul.u32 4, %s19
      %p201 = scmp.lt.s32.totalorder %s18, 1
      %s202 = scalar_select %p201, %s18, 1
      %p203 = scmp.lt.s32.totalorder %s200, 3
      %s204 = scalar_select %p203, %s200, 3
      %s205 = smul.addr %s202, 4
      %s206 = sadd.s32 %s204, %s205
      %s207 = smul.addr %s206, 8
      %s208 = scalar_lea.vmem %s3, %s207
      %s209 = smul.u32 4, %s19
      %v210 = vld [vmem:[%s198] sm:$0xff]
      %v211 = vld [vmem:[%s198 + $0x8] sm:$0xff]
      %v212 = vld [vmem:[%s198 + $0x10] sm:$0xff]
      %v213 = vld [vmem:[%s198 + $0x18] sm:$0xff]
      %v214 = vld [vmem:[%s198 + $0x20] sm:$0xff]
      %v215 = vld [vmem:[%s198 + $0x28] sm:$0xff]
      %v216 = vld [vmem:[%s198 + $0x30] sm:$0xff]
      %v217 = vld [vmem:[%s198 + $0x38] sm:$0xff]
      %v218 = vld [vmem:[%s198 + $0x40] sm:$0xff]
      %v219 = vld [vmem:[%s198 + $0x48] sm:$0xff]
      %v220 = vld [vmem:[%s198 + $0x50] sm:$0xff]
      %v221 = vld [vmem:[%s198 + $0x58] sm:$0xff]
      %v222 = vld [vmem:[%s198 + $0x60] sm:$0xff]
      %v223 = vld [vmem:[%s198 + $0x68] sm:$0xff]
      %v224 = vld [vmem:[%s198 + $0x70] sm:$0xff]
      %v225 = vld [vmem:[%s198 + $0x78] sm:$0xff]
      %v226 = vld [vmem:[%s1] sm:$0xff]
      %v227 = vld [vmem:[%s2] sm:$0xff]
      %229 = vset.pattern.permute.xlu0 0
      %230 = vperm.xlu0 %229, %v227
      %v231 = vpop.permute.xlu0 %230
      %vm233 = vcmask 261120
      %v235 = vsel %vm233, %v226, 0
      %237 = vmatpush.msra.mxu0 0.0
      %238 = vmatpush.msra.mxu0 0.0
      %239 = vmatpush.msra.mxu0 0.0
      %240 = vmatpush.msra.mxu0 0.0
      %241 = vmatpush.msra.mxu0 0.0
      %242 = vmatpush.msra.mxu0 0.0
      %243 = vmatpush.msra.mxu0 0.0
      %244 = vmatpush.msra.mxu0 0.0
      %245 = vmatpush.msra.mxu0 0.0
      %246 = vmatpush.msra.mxu0 0.0
      %247 = vmatpush.msra.mxu0 0.0
      %248 = vmatpush.msra.mxu0 0.0
      %249 = vmatpush.msra.mxu0 %v222
      %250 = vmatpush.msra.mxu0 %v218
      %251 = vmatpush.msra.mxu0 %v214
      %252 = vmatpush.msra.mxu0 %v210
      %253 = vmatmul.f32.gmra.mxu0 %v235
      %v254 = vpop.f32.mrf.mxu0
      %v255 = vadd.f32 %v231, %v254
      %256 = vdwg.mxu0
      %257 = vmatpush.msra.mxu0 0.0
      %258 = vmatpush.msra.mxu0 0.0
      %259 = vmatpush.msra.mxu0 0.0
      %260 = vmatpush.msra.mxu0 0.0
      %261 = vmatpush.msra.mxu0 0.0
      %262 = vmatpush.msra.mxu0 0.0
      %263 = vmatpush.msra.mxu0 0.0
      %264 = vmatpush.msra.mxu0 0.0
      %265 = vmatpush.msra.mxu0 0.0
      %266 = vmatpush.msra.mxu0 0.0
      %267 = vmatpush.msra.mxu0 0.0
      %268 = vmatpush.msra.mxu0 0.0
      %269 = vmatpush.msra.mxu0 %v223
      %270 = vmatpush.msra.mxu0 %v219
      %271 = vmatpush.msra.mxu0 %v215
      %272 = vmatpush.msra.mxu0 %v211
      %273 = vmatmul.f32.gmra.mxu0 %v235
      %v274 = vpop.f32.mrf.mxu0
      %v275 = vadd.f32 %v231, %v274
      %276 = vdwg.mxu0
      %277 = vmatpush.msra.mxu0 0.0
      %278 = vmatpush.msra.mxu0 0.0
      %279 = vmatpush.msra.mxu0 0.0
      %280 = vmatpush.msra.mxu0 0.0
      %281 = vmatpush.msra.mxu0 0.0
      %282 = vmatpush.msra.mxu0 0.0
      %283 = vmatpush.msra.mxu0 0.0
      %284 = vmatpush.msra.mxu0 0.0
      %285 = vmatpush.msra.mxu0 0.0
      %286 = vmatpush.msra.mxu0 0.0
      %287 = vmatpush.msra.mxu0 0.0
      %288 = vmatpush.msra.mxu0 0.0
      %289 = vmatpush.msra.mxu0 %v224
      %290 = vmatpush.msra.mxu0 %v220
      %291 = vmatpush.msra.mxu0 %v216
      %292 = vmatpush.msra.mxu0 %v212
      %293 = vmatmul.f32.gmra.mxu0 %v235
      %v294 = vpop.f32.mrf.mxu0
      %v295 = vadd.f32 %v231, %v294
      %296 = vdwg.mxu0
      %297 = vmatpush.msra.mxu0 0.0
      %298 = vmatpush.msra.mxu0 0.0
      %299 = vmatpush.msra.mxu0 0.0
      %300 = vmatpush.msra.mxu0 0.0
      %301 = vmatpush.msra.mxu0 0.0
      %302 = vmatpush.msra.mxu0 0.0
      %303 = vmatpush.msra.mxu0 0.0
      %304 = vmatpush.msra.mxu0 0.0
      %305 = vmatpush.msra.mxu0 0.0
      %306 = vmatpush.msra.mxu0 0.0
      %307 = vmatpush.msra.mxu0 0.0
      %308 = vmatpush.msra.mxu0 0.0
      %309 = vmatpush.msra.mxu0 %v225
      %310 = vmatpush.msra.mxu0 %v221
      %311 = vmatpush.msra.mxu0 %v217
      %312 = vmatpush.msra.mxu0 %v213
      %313 = vmatmul.f32.gmra.mxu0 %v235
      %v314 = vpop.f32.mrf.mxu0
      %v315 = vadd.f32 %v231, %v314
      %316 = vdwg.mxu0
      %317 = vst [vmem:[%s208] sm:$0xff] %v255
      %318 = vst [vmem:[%s208 + $0x8] sm:$0xff] %v275
      %319 = vst [vmem:[%s208 + $0x10] sm:$0xff] %v295
      %320 = vst [vmem:[%s208 + $0x18] sm:$0xff] %v315
      %s321 = smul.u32 4, %s19
      %p322 = scmp.lt.s32.totalorder %s18, 1
      %s323 = scalar_select %p322, %s18, 1
      %p324 = scmp.lt.s32.totalorder %s321, 3
      %s325 = scalar_select %p324, %s321, 3
      %s326 = smul.addr %s323, 4
      %s327 = sadd.s32 %s325, %s326
      %s328 = smul.addr %s327, 8
      %s329 = scalar_lea.vmem %s3, %s328
      // Predicated region
      $region33: #{downconv_forward.3} parent=31 // pred_check
        %p330 = pneg %p116
      $region34: #{downconv_forward.3} parent=31 // pred_check_branch
        %332 = sbr.rel (%p330) target = $region36
      $region35: #{downconv_forward.3} parent=31 // pred_region
        %s333 = smul.u32 4, %s19
      $region36: #{downconv_forward.3} parent=31 // pred_fallthru
        _
    $region32: #{downconv_forward.3} parent=5 // pred_fallthru
      _
    %p334 = scmp.le.s32.totalorder 2, %s9
    // Predicated region
    $region37: #{downconv_forward.3} parent=5 // pred_check
      %p335 = pneg %p334
    $region38: #{downconv_forward.3} parent=5 // pred_check_branch
      %337 = sbr.rel (%p335) target = $region40
    $region39: #{downconv_forward.3} parent=5 // pred_region
      %s338 = ssub.s32 %s9, 2
      // Predicated region
      $region41: #{downconv_forward.3} parent=39 // pred_check
        %p339 = pneg %p122
      $region42: #{downconv_forward.3} parent=39 // pred_check_branch
        %341 = sbr.rel (%p339) target = $region44
      $region43: #{downconv_forward.3} parent=39 // pred_region
        %s342 = smul.u32 4, %s21
        %p343 = scmp.lt.s32.totalorder %s20, 1
        %s344 = scalar_select %p343, %s20, 1
        %p345 = scmp.lt.s32.totalorder %s342, 3
        %s346 = scalar_select %p345, %s342, 3
        %s347 = smul.addr %s344, 4
        %s348 = sadd.s32 %s346, %s347
        %s349 = smul.addr %s348, 8
        %s350 = scalar_lea.vmem %s3, %s349
      $region44: #{downconv_forward.3} parent=39 // pred_fallthru
        _
    $region40: #{downconv_forward.3} parent=5 // pred_fallthru
      _
  $region6: #{downconv_forward.3} parent=0 // loop_footer
    %s13 = sadd.s32 1, %s9
  $region7: #{downconv_forward.3} parent=0 // loop_footer_branch
    %8 = sbr.rel target = $region3
  $region8: #{downconv_forward.3} parent=0 // loop_exit
    _

</llo_original>
